<compile_context>
chip_gen: v7x
topology: tpu7x:2x2x1
jax: 0.10.0
libtpu: 0.0.40
codegen_flags: <defaults>
</compile_context>

<pallas_src>
import functools
import math

import jax
import jax.numpy as jnp
from jax import lax
from jax.experimental import pallas as pl
from jax.experimental.pallas import tpu as pltpu

_LANE = 128
_SUBLANE = 8


def _round_up(n, m):
    return (n + m - 1) // m * m


# ----------------------------- Pallas kernel --------------------------------
def _resnet_block_kernel(
    x_ref,      # (1, Lp, Cinp) f32   rows >= L and lanes >= Cin are zero
    ss_ref,     # (1, 8, Cp)   f32    row0 = scale+1, row1 = shift (padded lanes 0)
    w1_ref,     # (3, Cinp, Cp) bf16  conv1 taps [prev, center, next]
    w2_ref,     # (3, Cp,  Cp)  bf16  conv2 taps [prev, center, next]
    wr_ref,     # (Cinp, Cp)    bf16  1x1 residual conv
    cst_ref,    # (8, Cp)      f32    rows: b1, g1*sqrt(C), b2, g2*sqrt(C), br, 0, 0, 0
    out_ref,    # (1, Lp, Cp)  f32
    *,
    L,          # static real sequence length (L <= Lp)
):
    f32 = jnp.float32
    bf16 = jnp.bfloat16
    Lp = out_ref.shape[1]

    cst = cst_ref[...]
    b1, g1 = cst[0:1, :], cst[1:2, :]
    b2, g2 = cst[2:3, :], cst[3:4, :]
    br = cst[4:5, :]
    ss = ss_ref[0]
    scale_p1, shift = ss[0:1, :], ss[1:2, :]

    def rmsnorm(y, g):
        # F.normalize(y, dim=channel) * g * sqrt(C)   (sqrt(C) pre-folded into g)
        sq = jnp.sum(y * y, axis=-1, keepdims=True)
        return y * lax.rsqrt(jnp.maximum(sq, 1e-24)) * g   # == y / max(||y||, 1e-12) * g

    def shifted(v):
        # v_prev[l] = v[l-1] (zero at l=0); v_next[l] = v[l+1] (zero at l=rows-1).
        # Small sublane-shifted copies (XLU relayout), no scratch round-trip,
        # no unaligned stores.
        rows = v.shape[0]
        z = jnp.zeros((1, v.shape[1]), v.dtype)
        v_prev = jnp.concatenate([z, v[: rows - 1, :]], axis=0)
        v_next = jnp.concatenate([v[1:, :], z], axis=0)
        return v_prev, v_next

    # --- block1: 3-tap conv (3 accumulating bf16 matmuls) -> norm -> scale/shift -> SiLU
    xc = x_ref[0].astype(bf16)                       # (Lp, Cinp)
    xp, xn = shifted(xc)
    h = jnp.dot(xp, w1_ref[0], preferred_element_type=f32)
    h = h + jnp.dot(xc, w1_ref[1], preferred_element_type=f32)
    h = h + jnp.dot(xn, w1_ref[2], preferred_element_type=f32)
    h = h + b1
    h = rmsnorm(h, g1)
    h = h * scale_p1 + shift
    h = jax.nn.silu(h)                               # dropout p=0.0 -> identity

    # zero any padded rows so block2's zero padding at row L-1 stays exact
    if L < Lp:
        row = lax.broadcasted_iota(jnp.int32, (Lp, 1), 0)
        h = jnp.where(row < L, h, 0.0)

    # --- block2: 3-tap conv -> norm -> SiLU ---
    hb = h.astype(bf16)
    hp, hn = shifted(hb)
    y = jnp.dot(hp, w2_ref[0], preferred_element_type=f32)
    y = y + jnp.dot(hb, w2_ref[1], preferred_element_type=f32)
    y = y + jnp.dot(hn, w2_ref[2], preferred_element_type=f32)
    y = y + b2
    y = rmsnorm(y, g2)
    y = jax.nn.silu(y)

    # --- residual 1x1 conv ---
    res = jnp.dot(xc, wr_ref[...], preferred_element_type=f32) + br

    out_ref[0] = (y + res).astype(out_ref.dtype)


# ------------------------------- wrapper -------------------------------------
def resnet_block(x_ncl, time_emb, p):
    """x_ncl: (B, Cin, L) f32; time_emb: (B, T) f32 -> (B, Cout, L) f32."""
    B, Cin, L = x_ncl.shape
    Cout = p["w1"].shape[0]
    f32, bf16 = jnp.float32, jnp.bfloat16

    Cinp = _round_up(Cin, _LANE)
    Cp = _round_up(Cout, _LANE)
    Lp = _round_up(L, _SUBLANE)

    # ---- hoisted time-embedding MLP: one XLA matmul for the whole batch ----
    te = jnp.dot(jax.nn.silu(time_emb), p["wm"].T) + p["bm"]        # (B, 2*Cout)
    ss = jnp.zeros((B, 8, Cp), f32)
    ss = ss.at[:, 0, :Cout].set(te[:, :Cout] + 1.0)                 # scale (+1 folded)
    ss = ss.at[:, 1, :Cout].set(te[:, Cout:])                       # shift

    # ---- pack conv weights: (Cout, Cin, 3) -> (3, Cin_pad, Cout_pad) bf16 taps ----
    def pack_conv(w_pt, cin, cinp):
        w = jnp.transpose(w_pt, (2, 1, 0))                          # (3, cin, Cout)
        return jnp.zeros((3, cinp, Cp), f32).at[:, :cin, :Cout].set(w).astype(bf16)

    w1 = pack_conv(p["w1"], Cin, Cinp)
    w2 = pack_conv(p["w2"], Cout, Cp)
    wr = jnp.zeros((Cinp, Cp), f32).at[:Cin, :Cout].set(p["wr"][:, :, 0].T).astype(bf16)

    sqc = math.sqrt(Cout)
    consts = jnp.zeros((8, Cp), f32)
    consts = consts.at[0, :Cout].set(p["b1"])
    consts = consts.at[1, :Cout].set(p["g1"] * sqc)
    consts = consts.at[2, :Cout].set(p["b2"])
    consts = consts.at[3, :Cout].set(p["g2"] * sqc)
    consts = consts.at[4, :Cout].set(p["br"])

    # ---- input: NCL -> channels-last (B, Lp, Cin_pad), padded rows/lanes are zero ----
    x_pad = jnp.zeros((B, Lp, Cinp), f32).at[:, :L, :Cin].set(
        jnp.transpose(x_ncl, (0, 2, 1)))

    # ---- generation-aware VMEM limit ----
    try:
        vmem_limit = int(pltpu.get_tpu_info().vmem_capacity_bytes * 3 // 4)
    except Exception:
        vmem_limit = 64 * 1024 * 1024

    flops = 2 * B * Lp * Cp * (3 * Cinp + 3 * Cp + Cinp)
    transcendentals = B * Lp * (2 * Cp + 2)
    bytes_accessed = int(x_pad.size * 4 + B * Lp * Cp * 4 + ss.size * 4
                         + consts.size * 4 + w1.size * 2 + w2.size * 2 + wr.size * 2)
    cost = pl.CostEstimate(flops=int(flops), transcendentals=int(transcendentals),
                           bytes_accessed=bytes_accessed)

    out = pl.pallas_call(
        functools.partial(_resnet_block_kernel, L=L),
        out_shape=jax.ShapeDtypeStruct((B, Lp, Cp), f32),
        grid=(B,),
        in_specs=[
            pl.BlockSpec((1, Lp, Cinp), lambda b: (b, 0, 0)),       # x
            pl.BlockSpec((1, 8, Cp), lambda b: (b, 0, 0)),          # scale/shift
            pl.BlockSpec((3, Cinp, Cp), lambda b: (0, 0, 0)),       # w1 taps
            pl.BlockSpec((3, Cp, Cp), lambda b: (0, 0, 0)),         # w2 taps
            pl.BlockSpec((Cinp, Cp), lambda b: (0, 0)),             # wr
            pl.BlockSpec((8, Cp), lambda b: (0, 0)),                # b/g constants
        ],
        out_specs=pl.BlockSpec((1, Lp, Cp), lambda b: (b, 0, 0)),
        compiler_params=pltpu.CompilerParams(
            dimension_semantics=("parallel",),      # batch sharded across TCs on v7x
            vmem_limit_bytes=vmem_limit,
        ),
        cost_estimate=cost,
    )(x_pad, ss, w1, w2, wr, consts)

    out = out[:, :L, :Cout]                                         # drop padding
    return jnp.transpose(out, (0, 2, 1))                            # (B, Cout, L)


# ------------------------- deterministic parameters ---------------------------
def init_params(key, dim, dim_out, time_emb_dim):
    ks = jax.random.split(key, 8)

    def unif(k, shape, fan_in):
        bound = 1.0 / math.sqrt(fan_in)
        return jax.random.uniform(k, shape, jnp.float32, -bound, bound)

    return dict(
        w1=unif(ks[0], (dim_out, dim, 3), dim * 3),          # Conv1d(dim, dim_out, 3)
        b1=unif(ks[1], (dim_out,), dim * 3),
        g1=jnp.ones((dim_out,), jnp.float32),                # RMSNorm.g init
        w2=unif(ks[2], (dim_out, dim_out, 3), dim_out * 3),  # Conv1d(dim_out, dim_out, 3)
        b2=unif(ks[3], (dim_out,), dim_out * 3),
        g2=jnp.ones((dim_out,), jnp.float32),
        wm=unif(ks[4], (2 * dim_out, time_emb_dim), time_emb_dim),  # Linear(T, 2*dim_out)
        bm=unif(ks[5], (2 * dim_out,), time_emb_dim),
        wr=unif(ks[6], (dim_out, dim, 1), dim),              # Conv1d(dim, dim_out, 1)
        br=unif(ks[7], (dim_out,), dim),
    )


# ----------------------- pure-JAX reference (NCL, as PyTorch) -----------------
def reference_forward(x_ncl, time_emb, p):
    def conv1d(x, w, b, pad):
        y = lax.conv_general_dilated(x, w, (1,), [(pad, pad)],
                                     dimension_numbers=("NCH", "OIH", "NCH"))
        return y + b[None, :, None]

    def rmsnorm(x, g):
        n = jnp.maximum(jnp.sqrt(jnp.sum(x * x, axis=1, keepdims=True)), 1e-12)
        return x / n * g[None, :, None] * math.sqrt(x.shape[1])

    silu = jax.nn.silu
    te = jnp.dot(silu(time_emb), p["wm"].T) + p["bm"]
    cout = p["w1"].shape[0]
    scale, shift = te[:, :cout, None], te[:, cout:, None]

    h = conv1d(x_ncl, p["w1"], p["b1"], 1)
    h = rmsnorm(h, p["g1"])
    h = h * (scale + 1.0) + shift
    h = silu(h)
    h = conv1d(h, p["w2"], p["b2"], 1)
    h = rmsnorm(h, p["g2"])
    h = silu(h)
    res = conv1d(x_ncl, p["wr"], p["br"], 0)
    return h + res


# --------------------------------- main ---------------------------------------
if __name__ == "__main__":
    B, dim, dim_out, L, T = 2, 4, 8, 16, 32

    key = jax.random.PRNGKey(0)
    kx, kt, kp = jax.random.split(key, 3)
    x = jax.random.normal(kx, (B, dim, L), jnp.float32)          # NCL, like PyTorch
    time_emb = jax.random.normal(kt, (B, T), jnp.float32)
    params = init_params(kp, dim, dim_out, T)

    out = jax.block_until_ready(resnet_block(x, time_emb, params))

    ref = reference_forward(x, time_emb, params)
    assert out.shape == (B, dim_out, L), out.shape
    err = float(jnp.max(jnp.abs(out - ref)))
    # bf16 MXU operands (f32 accumulation) -> loosened tolerance vs pure-f32 reference.
    assert jnp.allclose(out, ref, rtol=5e-2, atol=5e-2), f"max abs err = {err}"

    print("KERNEL_OK")
</pallas_src>

<mosaic_0001>
module attributes {stable_mosaic.version = 11 : i64} {
  func.func @_resnet_block_kernel(%arg0: i32, %arg1: memref<1x16x128xf32, #tpu.memory_space<vmem>>, %arg2: memref<1x8x128xf32, #tpu.memory_space<vmem>>, %arg3: memref<3x128x128xbf16, #tpu.memory_space<vmem>>, %arg4: memref<3x128x128xbf16, #tpu.memory_space<vmem>>, %arg5: memref<128x128xbf16, #tpu.memory_space<vmem>>, %arg6: memref<8x128xf32, #tpu.memory_space<vmem>>, %arg7: memref<1x16x128xf32, #tpu.memory_space<vmem>>) attributes {dimension_semantics = [#tpu.dimension_semantics<parallel>], iteration_bounds = array<i64: 2>, scalar_prefetch = 0 : i64, scratch_operands = 0 : i64, tpu.core_type = #tpu.core_type<tc>, window_params = [{transform_indices = @transform_0, window_bounds = array<i64: 1, 16, 128>}, {transform_indices = @transform_1, window_bounds = array<i64: 1, 8, 128>}, {pipeline_mode = #tpu.pipeline_mode<synchronous>, transform_indices = @transform_2, window_bounds = array<i64: 3, 128, 128>}, {pipeline_mode = #tpu.pipeline_mode<synchronous>, transform_indices = @transform_3, window_bounds = array<i64: 3, 128, 128>}, {pipeline_mode = #tpu.pipeline_mode<synchronous>, transform_indices = @transform_4, window_bounds = array<i64: 128, 128>}, {pipeline_mode = #tpu.pipeline_mode<synchronous>, transform_indices = @transform_5, window_bounds = array<i64: 8, 128>}, {transform_indices = @transform_6, window_bounds = array<i64: 1, 16, 128>}]} {
    %c0 = arith.constant 0 : index
    %c0_0 = arith.constant 0 : index
    %0 = vector.load %arg6[%c0, %c0_0] : memref<8x128xf32, #tpu.memory_space<vmem>>, vector<8x128xf32>
    %1 = vector.extract_strided_slice %0 {offsets = [0, 0], sizes = [1, 128], strides = [1, 1]} : vector<8x128xf32> to vector<1x128xf32>
    %2 = vector.extract_strided_slice %0 {offsets = [1, 0], sizes = [1, 128], strides = [1, 1]} : vector<8x128xf32> to vector<1x128xf32>
    %3 = vector.extract_strided_slice %0 {offsets = [2, 0], sizes = [1, 128], strides = [1, 1]} : vector<8x128xf32> to vector<1x128xf32>
    %4 = vector.extract_strided_slice %0 {offsets = [3, 0], sizes = [1, 128], strides = [1, 1]} : vector<8x128xf32> to vector<1x128xf32>
    %5 = vector.extract_strided_slice %0 {offsets = [4, 0], sizes = [1, 128], strides = [1, 1]} : vector<8x128xf32> to vector<1x128xf32>
    %c0_1 = arith.constant 0 : index
    %c0_2 = arith.constant 0 : index
    %c0_3 = arith.constant 0 : index
    %6 = vector.load %arg2[%c0_1, %c0_2, %c0_3] : memref<1x8x128xf32, #tpu.memory_space<vmem>>, vector<1x8x128xf32>
    %7 = vector.shape_cast %6 : vector<1x8x128xf32> to vector<8x128xf32>
    %8 = vector.extract_strided_slice %7 {offsets = [0, 0], sizes = [1, 128], strides = [1, 1]} : vector<8x128xf32> to vector<1x128xf32>
    %9 = vector.extract_strided_slice %7 {offsets = [1, 0], sizes = [1, 128], strides = [1, 1]} : vector<8x128xf32> to vector<1x128xf32>
    %c0_4 = arith.constant 0 : index
    %c0_5 = arith.constant 0 : index
    %c0_6 = arith.constant 0 : index
    %10 = vector.load %arg1[%c0_4, %c0_5, %c0_6] : memref<1x16x128xf32, #tpu.memory_space<vmem>>, vector<1x16x128xf32>
    %11 = vector.shape_cast %10 : vector<1x16x128xf32> to vector<16x128xf32>
    %12 = arith.truncf %11 : vector<16x128xf32> to vector<16x128xbf16>
    %cst = arith.constant 0.000000e+00 : bf16
    %13 = vector.broadcast %cst : bf16 to vector<1x128xbf16>
    %14 = vector.extract_strided_slice %12 {offsets = [0, 0], sizes = [15, 128], strides = [1, 1]} : vector<16x128xbf16> to vector<15x128xbf16>
    %15 = tpu.concatenate %13, %14 in 0 : vector<1x128xbf16>, vector<15x128xbf16> -> vector<16x128xbf16>
    %16 = vector.extract_strided_slice %12 {offsets = [1, 0], sizes = [15, 128], strides = [1, 1]} : vector<16x128xbf16> to vector<15x128xbf16>
    %17 = tpu.concatenate %16, %13 in 0 : vector<15x128xbf16>, vector<1x128xbf16> -> vector<16x128xbf16>
    %c0_7 = arith.constant 0 : index
    %c0_8 = arith.constant 0 : index
    %c0_9 = arith.constant 0 : index
    %18 = vector.load %arg3[%c0_7, %c0_8, %c0_9] : memref<3x128x128xbf16, #tpu.memory_space<vmem>>, vector<1x128x128xbf16>
    %19 = vector.shape_cast %18 : vector<1x128x128xbf16> to vector<128x128xbf16>
    %cst_10 = arith.constant dense<0.000000e+00> : vector<16x128xf32>
    %20 = tpu.matmul %15, %19, %cst_10 {dimension_numbers = #tpu.dot_dimension_numbers<[1], [0], [0], [1], [0, 0, 1, 1], [], []>} : vector<16x128xbf16>, vector<128x128xbf16>, vector<16x128xf32> -> vector<16x128xf32>
    %c1 = arith.constant 1 : index
    %c0_11 = arith.constant 0 : index
    %c0_12 = arith.constant 0 : index
    %21 = vector.load %arg3[%c1, %c0_11, %c0_12] : memref<3x128x128xbf16, #tpu.memory_space<vmem>>, vector<1x128x128xbf16>
    %22 = vector.shape_cast %21 : vector<1x128x128xbf16> to vector<128x128xbf16>
    %cst_13 = arith.constant dense<0.000000e+00> : vector<16x128xf32>
    %23 = tpu.matmul %12, %22, %cst_13 {dimension_numbers = #tpu.dot_dimension_numbers<[1], [0], [0], [1], [0, 0, 1, 1], [], []>} : vector<16x128xbf16>, vector<128x128xbf16>, vector<16x128xf32> -> vector<16x128xf32>
    %24 = arith.addf %20, %23 : vector<16x128xf32>
    %c2 = arith.constant 2 : index
    %c0_14 = arith.constant 0 : index
    %c0_15 = arith.constant 0 : index
    %25 = vector.load %arg3[%c2, %c0_14, %c0_15] : memref<3x128x128xbf16, #tpu.memory_space<vmem>>, vector<1x128x128xbf16>
    %26 = vector.shape_cast %25 : vector<1x128x128xbf16> to vector<128x128xbf16>
    %cst_16 = arith.constant dense<0.000000e+00> : vector<16x128xf32>
    %27 = tpu.matmul %17, %26, %cst_16 {dimension_numbers = #tpu.dot_dimension_numbers<[1], [0], [0], [1], [0, 0, 1, 1], [], []>} : vector<16x128xbf16>, vector<128x128xbf16>, vector<16x128xf32> -> vector<16x128xf32>
    %28 = arith.addf %24, %27 : vector<16x128xf32>
    %29 = vector.broadcast %1 : vector<1x128xf32> to vector<16x128xf32>
    %30 = arith.addf %28, %29 : vector<16x128xf32>
    %31 = arith.mulf %30, %30 : vector<16x128xf32>
    %cst_17 = arith.constant dense<0.000000e+00> : vector<16xf32>
    %32 = vector.multi_reduction <add>, %31, %cst_17 [1] : vector<16x128xf32> to vector<16xf32>
    %33 = vector.shape_cast %32 : vector<16xf32> to vector<16x1xf32>
    %cst_18 = arith.constant 1.000000e-24 : f32
    %34 = vector.broadcast %cst_18 : f32 to vector<16x1xf32>
    %35 = arith.maximumf %33, %34 : vector<16x1xf32>
    %36 = math.rsqrt %35 : vector<16x1xf32>
    %37 = vector.broadcast %36 : vector<16x1xf32> to vector<16x128xf32>
    %38 = arith.mulf %30, %37 : vector<16x128xf32>
    %39 = vector.broadcast %2 : vector<1x128xf32> to vector<16x128xf32>
    %40 = arith.mulf %38, %39 : vector<16x128xf32>
    %41 = vector.broadcast %8 : vector<1x128xf32> to vector<16x128xf32>
    %42 = arith.mulf %40, %41 : vector<16x128xf32>
    %43 = vector.broadcast %9 : vector<1x128xf32> to vector<16x128xf32>
    %44 = arith.addf %42, %43 : vector<16x128xf32>
    %45 = arith.negf %44 : vector<16x128xf32>
    %46 = math.exp %45 : vector<16x128xf32>
    %cst_19 = arith.constant 1.000000e+00 : f32
    %47 = vector.broadcast %cst_19 : f32 to vector<16x128xf32>
    %48 = arith.addf %47, %46 : vector<16x128xf32>
    %49 = arith.divf %47, %48 : vector<16x128xf32>
    %50 = arith.mulf %44, %49 : vector<16x128xf32>
    %51 = arith.truncf %50 : vector<16x128xf32> to vector<16x128xbf16>
    %cst_20 = arith.constant 0.000000e+00 : bf16
    %52 = vector.broadcast %cst_20 : bf16 to vector<1x128xbf16>
    %53 = vector.extract_strided_slice %51 {offsets = [0, 0], sizes = [15, 128], strides = [1, 1]} : vector<16x128xbf16> to vector<15x128xbf16>
    %54 = tpu.concatenate %52, %53 in 0 : vector<1x128xbf16>, vector<15x128xbf16> -> vector<16x128xbf16>
    %55 = vector.extract_strided_slice %51 {offsets = [1, 0], sizes = [15, 128], strides = [1, 1]} : vector<16x128xbf16> to vector<15x128xbf16>
    %56 = tpu.concatenate %55, %52 in 0 : vector<15x128xbf16>, vector<1x128xbf16> -> vector<16x128xbf16>
    %c0_21 = arith.constant 0 : index
    %c0_22 = arith.constant 0 : index
    %c0_23 = arith.constant 0 : index
    %57 = vector.load %arg4[%c0_21, %c0_22, %c0_23] : memref<3x128x128xbf16, #tpu.memory_space<vmem>>, vector<1x128x128xbf16>
    %58 = vector.shape_cast %57 : vector<1x128x128xbf16> to vector<128x128xbf16>
    %cst_24 = arith.constant dense<0.000000e+00> : vector<16x128xf32>
    %59 = tpu.matmul %54, %58, %cst_24 {dimension_numbers = #tpu.dot_dimension_numbers<[1], [0], [0], [1], [0, 0, 1, 1], [], []>} : vector<16x128xbf16>, vector<128x128xbf16>, vector<16x128xf32> -> vector<16x128xf32>
    %c1_25 = arith.constant 1 : index
    %c0_26 = arith.constant 0 : index
    %c0_27 = arith.constant 0 : index
    %60 = vector.load %arg4[%c1_25, %c0_26, %c0_27] : memref<3x128x128xbf16, #tpu.memory_space<vmem>>, vector<1x128x128xbf16>
    %61 = vector.shape_cast %60 : vector<1x128x128xbf16> to vector<128x128xbf16>
    %cst_28 = arith.constant dense<0.000000e+00> : vector<16x128xf32>
    %62 = tpu.matmul %51, %61, %cst_28 {dimension_numbers = #tpu.dot_dimension_numbers<[1], [0], [0], [1], [0, 0, 1, 1], [], []>} : vector<16x128xbf16>, vector<128x128xbf16>, vector<16x128xf32> -> vector<16x128xf32>
    %63 = arith.addf %59, %62 : vector<16x128xf32>
    %c2_29 = arith.constant 2 : index
    %c0_30 = arith.constant 0 : index
    %c0_31 = arith.constant 0 : index
    %64 = vector.load %arg4[%c2_29, %c0_30, %c0_31] : memref<3x128x128xbf16, #tpu.memory_space<vmem>>, vector<1x128x128xbf16>
    %65 = vector.shape_cast %64 : vector<1x128x128xbf16> to vector<128x128xbf16>
    %cst_32 = arith.constant dense<0.000000e+00> : vector<16x128xf32>
    %66 = tpu.matmul %56, %65, %cst_32 {dimension_numbers = #tpu.dot_dimension_numbers<[1], [0], [0], [1], [0, 0, 1, 1], [], []>} : vector<16x128xbf16>, vector<128x128xbf16>, vector<16x128xf32> -> vector<16x128xf32>
    %67 = arith.addf %63, %66 : vector<16x128xf32>
    %68 = vector.broadcast %3 : vector<1x128xf32> to vector<16x128xf32>
    %69 = arith.addf %67, %68 : vector<16x128xf32>
    %70 = arith.mulf %69, %69 : vector<16x128xf32>
    %cst_33 = arith.constant dense<0.000000e+00> : vector<16xf32>
    %71 = vector.multi_reduction <add>, %70, %cst_33 [1] : vector<16x128xf32> to vector<16xf32>
    %72 = vector.shape_cast %71 : vector<16xf32> to vector<16x1xf32>
    %cst_34 = arith.constant 1.000000e-24 : f32
    %73 = vector.broadcast %cst_34 : f32 to vector<16x1xf32>
    %74 = arith.maximumf %72, %73 : vector<16x1xf32>
    %75 = math.rsqrt %74 : vector<16x1xf32>
    %76 = vector.broadcast %75 : vector<16x1xf32> to vector<16x128xf32>
    %77 = arith.mulf %69, %76 : vector<16x128xf32>
    %78 = vector.broadcast %4 : vector<1x128xf32> to vector<16x128xf32>
    %79 = arith.mulf %77, %78 : vector<16x128xf32>
    %80 = arith.negf %79 : vector<16x128xf32>
    %81 = math.exp %80 : vector<16x128xf32>
    %cst_35 = arith.constant 1.000000e+00 : f32
    %82 = vector.broadcast %cst_35 : f32 to vector<16x128xf32>
    %83 = arith.addf %82, %81 : vector<16x128xf32>
    %84 = arith.divf %82, %83 : vector<16x128xf32>
    %85 = arith.mulf %79, %84 : vector<16x128xf32>
    %c0_36 = arith.constant 0 : index
    %c0_37 = arith.constant 0 : index
    %86 = vector.load %arg5[%c0_36, %c0_37] : memref<128x128xbf16, #tpu.memory_space<vmem>>, vector<128x128xbf16>
    %cst_38 = arith.constant dense<0.000000e+00> : vector<16x128xf32>
    %87 = tpu.matmul %12, %86, %cst_38 {dimension_numbers = #tpu.dot_dimension_numbers<[1], [0], [0], [1], [0, 0, 1, 1], [], []>} : vector<16x128xbf16>, vector<128x128xbf16>, vector<16x128xf32> -> vector<16x128xf32>
    %88 = vector.broadcast %5 : vector<1x128xf32> to vector<16x128xf32>
    %89 = arith.addf %87, %88 : vector<16x128xf32>
    %90 = arith.addf %85, %89 : vector<16x128xf32>
    %c0_39 = arith.constant 0 : index
    %c0_40 = arith.constant 0 : index
    %c0_41 = arith.constant 0 : index
    %91 = vector.load %arg7[%c0_39, %c0_40, %c0_41] : memref<1x16x128xf32, #tpu.memory_space<vmem>>, vector<1x16x128xf32>
    %92 = vector.shape_cast %91 : vector<1x16x128xf32> to vector<16x128xf32>
    %93 = vector.shape_cast %90 : vector<16x128xf32> to vector<1x16x128xf32>
    tpu.vector_store %arg7[%c0_39, %c0_40, %c0_41], %93 {strides = array<i32>} : memref<1x16x128xf32, #tpu.memory_space<vmem>>, vector<1x16x128xf32>,
    return
  }
  func.func @transform_0(%arg0: i32) -> (i32, i32, i32) {
    %c0_i32 = arith.constant 0 : i32
    %c0_i32_0 = arith.constant 0 : i32
    %c0_i32_1 = arith.constant 0 : i32
    return %arg0, %c0_i32, %c0_i32_0 : i32, i32, i32
  }
  func.func @transform_1(%arg0: i32) -> (i32, i32, i32) {
    %c0_i32 = arith.constant 0 : i32
    %c0_i32_0 = arith.constant 0 : i32
    %c0_i32_1 = arith.constant 0 : i32
    return %arg0, %c0_i32, %c0_i32_0 : i32, i32, i32
  }
  func.func @transform_2(%arg0: i32) -> (i32, i32, i32) {
    %c0_i32 = arith.constant 0 : i32
    %c0_i32_0 = arith.constant 0 : i32
    %c0_i32_1 = arith.constant 0 : i32
    %c0_i32_2 = arith.constant 0 : i32
    return %c0_i32, %c0_i32_0, %c0_i32_1 : i32, i32, i32
  }
  func.func @transform_3(%arg0: i32) -> (i32, i32, i32) {
    %c0_i32 = arith.constant 0 : i32
    %c0_i32_0 = arith.constant 0 : i32
    %c0_i32_1 = arith.constant 0 : i32
    %c0_i32_2 = arith.constant 0 : i32
    return %c0_i32, %c0_i32_0, %c0_i32_1 : i32, i32, i32
  }
  func.func @transform_4(%arg0: i32) -> (i32, i32) {
    %c0_i32 = arith.constant 0 : i32
    %c0_i32_0 = arith.constant 0 : i32
    %c0_i32_1 = arith.constant 0 : i32
    return %c0_i32, %c0_i32_0 : i32, i32
  }
  func.func @transform_5(%arg0: i32) -> (i32, i32) {
    %c0_i32 = arith.constant 0 : i32
    %c0_i32_0 = arith.constant 0 : i32
    %c0_i32_1 = arith.constant 0 : i32
    return %c0_i32, %c0_i32_0 : i32, i32
  }
  func.func @transform_6(%arg0: i32) -> (i32, i32, i32) {
    %c0_i32 = arith.constant 0 : i32
    %c0_i32_0 = arith.constant 0 : i32
    %c0_i32_1 = arith.constant 0 : i32
    return %arg0, %c0_i32, %c0_i32_0 : i32, i32, i32
  }
}

</mosaic_0001>

<llo_original>
// kernel: tpu_custom_call.1
$region0: #{tpu_custom_call.1}
  #allocation0 [shape = 'u32[]', space=smem, size = 0x4, offset = 0x4, fixed_abs, tag = 'smem constant byte address 0x4 - core index']
  #allocation1 [shape = 'u32[144,128]{1,0:T(1,128)}', space=vmem, size = 0x12000, scoped, tag = 'internal scratch']
  %s0 = inlined_call_operand.hbm [shape: f32[2,16,128], index: 0, kind: input, shape index: {}]
  %s1 = inlined_call_operand.hbm [shape: f32[2,8,128], index: 1, kind: input, shape index: {}]
  %s2 = inlined_call_operand.hbm [shape: bf16[3,128,128], index: 2, kind: input, shape index: {}]
  %s3 = inlined_call_operand.hbm [shape: bf16[3,128,128], index: 3, kind: input, shape index: {}]
  %s4 = inlined_call_operand.hbm [shape: bf16[128,128], index: 4, kind: input, shape index: {}]
  %s5 = inlined_call_operand.hbm [shape: f32[8,128], index: 5, kind: input, shape index: {}]
  %s6 = inlined_call_operand.hbm [shape: f32[2,16,128], index: 6, kind: output, shape index: {}]
  %s7 = sld [smem:[#allocation0]]
  $region81: #{tpu_custom_call.1} parent=0
    _
  %s9 = ssub.s32 1, %s7
  %s10 = scalar_select 0, %s9, %s7
  $region1: #{tpu_custom_call.1} parent=0
    #allocation2 [shape = 'u8[16384]{0}', space=vmem, size = 0x4000, scoped, tag = 'input window, operand 0']
    #allocation3 [shape = 's32[2]{0}', space=sflag, size = 0x8, scoped, tag = 'scoped memory for tpu_custom_call.1']
    #allocation4 [shape = 's32[2]{0}', space=sflag, size = 0x8, scoped, tag = 'scoped memory for tpu_custom_call.1']
    #allocation5 [shape = 'u8[8192]{0}', space=vmem, size = 0x2000, scoped, tag = 'input window, operand 1']
    #allocation6 [shape = 's32[2]{0}', space=sflag, size = 0x8, scoped, tag = 'scoped memory for tpu_custom_call.1']
    #allocation7 [shape = 'u8[98304]{0}', space=vmem, size = 0x18000, scoped, tag = 'input window, operand 2, single buffered']
    #allocation8 [shape = 'u8[98304]{0}', space=vmem, size = 0x18000, scoped, tag = 'input window, operand 3, single buffered']
    #allocation9 [shape = 's32[1]{0}', space=sflag, size = 0x4, scoped, tag = 'scoped memory for tpu_custom_call.1']
    #allocation10 [shape = 'u8[32768]{0}', space=vmem, size = 0x8000, scoped, tag = 'input window, operand 4, single buffered']
    #allocation11 [shape = 'u8[4096]{0}', space=vmem, size = 0x1000, scoped, tag = 'input window, operand 5, single buffered']
    #allocation12 [shape = 's32[1]{0}', space=sflag, size = 0x4, scoped, tag = 'scoped memory for tpu_custom_call.1']
    #allocation13 [shape = 'u8[16384]{0}', space=vmem, size = 0x4000, scoped, tag = 'output window, operand 0']
    %11 = vsyncpa [#allocation3], 0
    %s12 = scalar_lea.sflag [#allocation3], 1
    %13 = vsyncpa %s12, 0
    %14 = vsyncpa [#allocation6], 0
    %s15 = scalar_lea.sflag [#allocation6], 1
    %16 = vsyncpa %s15, 0
    %17 = vsyncpa [#allocation9], 0
    %18 = vsyncpa [#allocation12], 0
    %19 = vsyncpa [#allocation4], 0
    %s20 = scalar_lea.sflag [#allocation4], 1
    %21 = vsyncpa %s20, 0
    loop: start=0, step=1, limit=4
    $region2: #{tpu_custom_call.1} parent=1 // loop_pre_header
      _
    $region3: #{tpu_custom_call.1} parent=1 // loop_header
      %s23 = sphi 0, %s27
      %p24 = scmp.ge.s32.totalorder %s23, 4
      %s33 = sphi 0, %s35
      %s36 = sphi 0, %s33
      %s37 = sphi 0, %s36
      %s53 = sphi 0, %s37
      %s59 = sphi 0, %s61
      %s62 = sphi 0, %s59
      %s63 = sphi 0, %s62
      %s79 = sphi 0, %s63
      %s83 = sphi 0, %s83
      %s85 = sphi 0, %s83
      %s86 = sphi 0, %s85
      %s100 = sphi 0, %s86
      %s104 = sphi 0, %s104
      %s106 = sphi 0, %s104
      %s107 = sphi 0, %s106
      %s121 = sphi 0, %s107
      %s125 = sphi 0, %s125
      %s127 = sphi 0, %s125
      %s128 = sphi 0, %s127
      %s142 = sphi 0, %s128
      %s146 = sphi 0, %s146
      %s148 = sphi 0, %s146
      %s149 = sphi 0, %s148
      %s163 = sphi 0, %s149
      %s169 = sphi 0, %s171
      %s172 = sphi 0, %s169
      %s173 = sphi 0, %s172
      %s189 = sphi 0, %s173
    $region4: #{tpu_custom_call.1} parent=1 // loop_header_branch
      %26 = sbr.rel (%p24) target = $region8
    $region5: #{tpu_custom_call.1} parent=1 // loop_body
      %s28 = ssub.s32 %s23, 1
      %s29 = ssub.s32 %s23, 2
      %s30 = sadd.s32 %s23, 1
      %s31 = ssub.s32 %s23, %s30
      %p32 = scmp.eq.s32.totalorder %s31, 0
      %s34 = sadd.s32 %s33, 1
      %s35 = scalar_select %p32, %s33, %s34
      %p38 = pneg %p32
      %p39 = scmp.eq.s32.totalorder %s23, 1
      %p40 = por %p38, %p39
      %p41 = scmp.ne.s32.totalorder %s33, %s36
      %p42 = scmp.eq.s32.totalorder %s23, 0
      %p43 = por %p41, %p42
      %p44 = scmp.ne.s32.totalorder %s33, %s36
      %p45 = scmp.eq.s32.totalorder %s28, 1
      %p46 = por %p44, %p45
      %p47 = scmp.ne.s32.totalorder %s36, %s37
      %p48 = scmp.eq.s32.totalorder %s28, 0
      %p49 = por %p47, %p48
      %p50 = scmp.ne.s32.totalorder %s36, %s37
      %p51 = scmp.eq.s32.totalorder %s29, 1
      %p52 = por %p50, %p51
      %p54 = scmp.ne.s32.totalorder %s37, %s53
      %p55 = scmp.eq.s32.totalorder %s29, 0
      %p56 = por %p54, %p55
      %s57 = ssub.s32 %s23, %s30
      %p58 = scmp.eq.s32.totalorder %s57, 0
      %s60 = sadd.s32 %s59, 1
      %s61 = scalar_select %p58, %s59, %s60
      %p64 = pneg %p58
      %p65 = scmp.eq.s32.totalorder %s23, 1
      %p66 = por %p64, %p65
      %p67 = scmp.ne.s32.totalorder %s59, %s62
      %p68 = scmp.eq.s32.totalorder %s23, 0
      %p69 = por %p67, %p68
      %p70 = scmp.ne.s32.totalorder %s59, %s62
      %p71 = scmp.eq.s32.totalorder %s28, 1
      %p72 = por %p70, %p71
      %p73 = scmp.ne.s32.totalorder %s62, %s63
      %p74 = scmp.eq.s32.totalorder %s28, 0
      %p75 = por %p73, %p74
      %p76 = scmp.ne.s32.totalorder %s62, %s63
      %p77 = scmp.eq.s32.totalorder %s29, 1
      %p78 = por %p76, %p77
      %p80 = scmp.ne.s32.totalorder %s63, %s79
      %p81 = scmp.eq.s32.totalorder %s29, 0
      %p82 = por %p80, %p81
      %s84 = sadd.s32 %s83, 1
      %p87 = scmp.eq.s32.totalorder %s23, 1
      %p88 = scmp.ne.s32.totalorder %s83, %s85
      %p89 = scmp.eq.s32.totalorder %s23, 0
      %p90 = por %p88, %p89
      %p91 = scmp.ne.s32.totalorder %s83, %s85
      %p92 = scmp.eq.s32.totalorder %s28, 1
      %p93 = por %p91, %p92
      %p94 = scmp.ne.s32.totalorder %s85, %s86
      %p95 = scmp.eq.s32.totalorder %s28, 0
      %p96 = por %p94, %p95
      %p97 = scmp.ne.s32.totalorder %s85, %s86
      %p98 = scmp.eq.s32.totalorder %s29, 1
      %p99 = por %p97, %p98
      %p101 = scmp.ne.s32.totalorder %s86, %s100
      %p102 = scmp.eq.s32.totalorder %s29, 0
      %p103 = por %p101, %p102
      %s105 = sadd.s32 %s104, 1
      %p108 = scmp.eq.s32.totalorder %s23, 1
      %p109 = scmp.ne.s32.totalorder %s104, %s106
      %p110 = scmp.eq.s32.totalorder %s23, 0
      %p111 = por %p109, %p110
      %p112 = scmp.ne.s32.totalorder %s104, %s106
      %p113 = scmp.eq.s32.totalorder %s28, 1
      %p114 = por %p112, %p113
      %p115 = scmp.ne.s32.totalorder %s106, %s107
      %p116 = scmp.eq.s32.totalorder %s28, 0
      %p117 = por %p115, %p116
      %p118 = scmp.ne.s32.totalorder %s106, %s107
      %p119 = scmp.eq.s32.totalorder %s29, 1
      %p120 = por %p118, %p119
      %p122 = scmp.ne.s32.totalorder %s107, %s121
      %p123 = scmp.eq.s32.totalorder %s29, 0
      %p124 = por %p122, %p123
      %s126 = sadd.s32 %s125, 1
      %p129 = scmp.eq.s32.totalorder %s23, 1
      %p130 = scmp.ne.s32.totalorder %s125, %s127
      %p131 = scmp.eq.s32.totalorder %s23, 0
      %p132 = por %p130, %p131
      %p133 = scmp.ne.s32.totalorder %s125, %s127
      %p134 = scmp.eq.s32.totalorder %s28, 1
      %p135 = por %p133, %p134
      %p136 = scmp.ne.s32.totalorder %s127, %s128
      %p137 = scmp.eq.s32.totalorder %s28, 0
      %p138 = por %p136, %p137
      %p139 = scmp.ne.s32.totalorder %s127, %s128
      %p140 = scmp.eq.s32.totalorder %s29, 1
      %p141 = por %p139, %p140
      %p143 = scmp.ne.s32.totalorder %s128, %s142
      %p144 = scmp.eq.s32.totalorder %s29, 0
      %p145 = por %p143, %p144
      %s147 = sadd.s32 %s146, 1
      %p150 = scmp.eq.s32.totalorder %s23, 1
      %p151 = scmp.ne.s32.totalorder %s146, %s148
      %p152 = scmp.eq.s32.totalorder %s23, 0
      %p153 = por %p151, %p152
      %p154 = scmp.ne.s32.totalorder %s146, %s148
      %p155 = scmp.eq.s32.totalorder %s28, 1
      %p156 = por %p154, %p155
      %p157 = scmp.ne.s32.totalorder %s148, %s149
      %p158 = scmp.eq.s32.totalorder %s28, 0
      %p159 = por %p157, %p158
      %p160 = scmp.ne.s32.totalorder %s148, %s149
      %p161 = scmp.eq.s32.totalorder %s29, 1
      %p162 = por %p160, %p161
      %p164 = scmp.ne.s32.totalorder %s149, %s163
      %p165 = scmp.eq.s32.totalorder %s29, 0
      %p166 = por %p164, %p165
      %s167 = ssub.s32 %s23, %s30
      %p168 = scmp.eq.s32.totalorder %s167, 0
      %s170 = sadd.s32 %s169, 1
      %s171 = scalar_select %p168, %s169, %s170
      %p174 = pneg %p168
      %p175 = scmp.eq.s32.totalorder %s23, 1
      %p176 = por %p174, %p175
      %p177 = scmp.ne.s32.totalorder %s169, %s172
      %p178 = scmp.eq.s32.totalorder %s23, 0
      %p179 = por %p177, %p178
      %p180 = scmp.ne.s32.totalorder %s169, %s172
      %p181 = scmp.eq.s32.totalorder %s28, 1
      %p182 = por %p180, %p181
      %p183 = scmp.ne.s32.totalorder %s172, %s173
      %p184 = scmp.eq.s32.totalorder %s28, 0
      %p185 = por %p183, %p184
      %p186 = scmp.ne.s32.totalorder %s172, %s173
      %p187 = scmp.eq.s32.totalorder %s29, 1
      %p188 = por %p186, %p187
      %p190 = scmp.ne.s32.totalorder %s173, %s189
      %p191 = scmp.eq.s32.totalorder %s29, 0
      %p192 = por %p190, %p191
      %p193 = scmp.le.s32.totalorder 1, %s23
      %p194 = scmp.lt.s32.totalorder %s23, 3
      %p195 = pnand %p193, %p194
      %p196 = pneg %p195
      // Predicated region
      $region9: #{tpu_custom_call.1} parent=5 // pred_check
        _
      $region10: #{tpu_custom_call.1} parent=5 // pred_check_branch
        %198 = sbr.rel (%p195) target = $region12
      $region11: #{tpu_custom_call.1} parent=5 // pred_region
        %s199 = ssub.s32 %s23, 1
        // Predicated region
        $region13: #{tpu_custom_call.1} parent=11 // pred_check
          %p200 = pneg %p96
        $region14: #{tpu_custom_call.1} parent=11 // pred_check_branch
          %202 = sbr.rel (%p200) target = $region16
        $region15: #{tpu_custom_call.1} parent=11 // pred_region
          %s204 = ssub.s32 3072, 3072
          %205 = vsyncadd [#allocation6], %s204
          %s206 = sshll.u32 [#allocation7], 4
          %s207 = int_to_ptr.vmem [resolvable:$true] %s206
          %212 = dma.hbm_to_vmem [thread:$0]  %s2, 3072, %s207, [#allocation6], 64, 64, 4
        $region16: #{tpu_custom_call.1} parent=11 // pred_fallthru
          _
        // Predicated region
        $region17: #{tpu_custom_call.1} parent=11 // pred_check
          %p213 = pneg %p117
        $region18: #{tpu_custom_call.1} parent=11 // pred_check_branch
          %215 = sbr.rel (%p213) target = $region20
        $region19: #{tpu_custom_call.1} parent=11 // pred_region
          %s217 = ssub.s32 3072, 3072
          %218 = vsyncadd [#allocation9], %s217
          %s219 = sshll.u32 [#allocation8], 4
          %s220 = int_to_ptr.vmem [resolvable:$true] %s219
          %225 = dma.hbm_to_vmem [thread:$0]  %s3, 3072, %s220, [#allocation9], 64, 64, 4
        $region20: #{tpu_custom_call.1} parent=11 // pred_fallthru
          _
        // Predicated region
        $region21: #{tpu_custom_call.1} parent=11 // pred_check
          %p226 = pneg %p138
        $region22: #{tpu_custom_call.1} parent=11 // pred_check_branch
          %228 = sbr.rel (%p226) target = $region24
        $region23: #{tpu_custom_call.1} parent=11 // pred_region
          %s230 = ssub.s32 1024, 1024
          %231 = vsyncadd [#allocation9], %s230
          %s232 = sshll.u32 [#allocation10], 4
          %s233 = int_to_ptr.vmem [resolvable:$true] %s232
          %238 = dma.hbm_to_vmem [thread:$0]  %s4, 1024, %s233, [#allocation9], 64, 64, 4
        $region24: #{tpu_custom_call.1} parent=11 // pred_fallthru
          _
        // Predicated region
        $region25: #{tpu_custom_call.1} parent=11 // pred_check
          %p239 = pneg %p159
        $region26: #{tpu_custom_call.1} parent=11 // pred_check_branch
          %241 = sbr.rel (%p239) target = $region28
        $region27: #{tpu_custom_call.1} parent=11 // pred_region
          %s243 = ssub.s32 128, 128
          %244 = vsyncadd [#allocation12], %s243
          %s246 = sshll.u32 [#allocation11], 4
          %s247 = int_to_ptr.vmem [resolvable:$true] %s246
          %249 = dma.hbm_to_vmem [thread:$0]  %s5, 128, %s247, [#allocation12]
        $region28: #{tpu_custom_call.1} parent=11 // pred_fallthru
          _
      $region12: #{tpu_custom_call.1} parent=5 // pred_fallthru
        _
      %p250 = scmp.lt.s32.totalorder %s23, 2
      // Predicated region
      $region29: #{tpu_custom_call.1} parent=5 // pred_check
        %p251 = pneg %p250
      $region30: #{tpu_custom_call.1} parent=5 // pred_check_branch
        %253 = sbr.rel (%p251) target = $region32
      $region31: #{tpu_custom_call.1} parent=5 // pred_region
        // Predicated region
        $region33: #{tpu_custom_call.1} parent=31 // pred_check
          %p254 = pneg %p43
        $region34: #{tpu_custom_call.1} parent=31 // pred_check_branch
          %256 = sbr.rel (%p254) target = $region36
        $region35: #{tpu_custom_call.1} parent=31 // pred_region
          %s257 = sand.u32 %s33, 1
          %s258 = scalar_lea.sflag [#allocation3], %s257
          %s259 = sand.u32 %s33, 1
          %s260 = smul.addr %s259, 16
          %s261 = scalar_lea.vmem [#allocation2], %s260
          %s263 = ssub.s32 256, 256
          %264 = vsyncadd %s258, %s263
          %s265 = smul.addr %s23, 2
          %s266 = smul.addr %s265, 128
          %s267 = scalar_lea.hbm %s0, %s266
          %s268 = sshll.u32 %s261, 4
          %s269 = int_to_ptr.vmem [resolvable:$true] %s268
          %274 = dma.hbm_to_vmem [thread:$0]  %s267, 256, %s269, %s258, 128, 128, 8
        $region36: #{tpu_custom_call.1} parent=31 // pred_fallthru
          _
        // Predicated region
        $region37: #{tpu_custom_call.1} parent=31 // pred_check
          %p275 = pneg %p69
        $region38: #{tpu_custom_call.1} parent=31 // pred_check_branch
          %277 = sbr.rel (%p275) target = $region40
        $region39: #{tpu_custom_call.1} parent=31 // pred_region
          %s278 = sand.u32 %s23, 1
          %s279 = scalar_lea.sflag [#allocation6], %s278
          %s280 = sand.u32 %s59, 1
          %s281 = smul.addr %s280, 8
          %s282 = scalar_lea.vmem [#allocation5], %s281
          %s284 = ssub.s32 128, 128
          %285 = vsyncadd %s279, %s284
          %s286 = smul.addr %s23, 128
          %s287 = scalar_lea.hbm %s1, %s286
          %s289 = sshll.u32 %s282, 4
          %s290 = int_to_ptr.vmem [resolvable:$true] %s289
          %292 = dma.hbm_to_vmem [thread:$0]  %s287, 128, %s290, %s279
        $region40: #{tpu_custom_call.1} parent=31 // pred_fallthru
          _
      $region32: #{tpu_custom_call.1} parent=5 // pred_fallthru
        _
      %p293 = scmp.le.s32.totalorder 1, %s23
      %p294 = scmp.lt.s32.totalorder %s23, 3
      %p295 = pnand %p293, %p294
      %p296 = pneg %p295
      // Predicated region
      $region41: #{tpu_custom_call.1} parent=5 // pred_check
        _
      $region42: #{tpu_custom_call.1} parent=5 // pred_check_branch
        %298 = sbr.rel (%p295) target = $region44
      $region43: #{tpu_custom_call.1} parent=5 // pred_region
        %s299 = ssub.s32 %s23, 1
        %s300 = sand.u32 %s36, 1
        %s301 = scalar_lea.sflag [#allocation3], %s300
        %s302 = sand.u32 %s36, 1
        %s303 = smul.addr %s302, 16
        %s304 = scalar_lea.vmem [#allocation2], %s303
        // Predicated region
        $region45: #{tpu_custom_call.1} parent=43 // pred_check
          %p305 = pneg %p49
        $region46: #{tpu_custom_call.1} parent=43 // pred_check_branch
          %307 = sbr.rel (%p305) target = $region48
        $region47: #{tpu_custom_call.1} parent=43 // pred_region
          %308 = dma.done %s301, 256
        $region48: #{tpu_custom_call.1} parent=43 // pred_fallthru
          _
        %s309 = sand.u32 %s28, 1
        %s310 = scalar_lea.sflag [#allocation6], %s309
        %s311 = sand.u32 %s62, 1
        %s312 = smul.addr %s311, 8
        %s313 = scalar_lea.vmem [#allocation5], %s312
        // Predicated region
        $region49: #{tpu_custom_call.1} parent=43 // pred_check
          %p314 = pneg %p75
        $region50: #{tpu_custom_call.1} parent=43 // pred_check_branch
          %316 = sbr.rel (%p314) target = $region52
        $region51: #{tpu_custom_call.1} parent=43 // pred_region
          %317 = dma.done %s310, 128
        $region52: #{tpu_custom_call.1} parent=43 // pred_fallthru
          _
        // Predicated region
        $region53: #{tpu_custom_call.1} parent=43 // pred_check
          %p318 = pneg %p96
        $region54: #{tpu_custom_call.1} parent=43 // pred_check_branch
          %320 = sbr.rel (%p318) target = $region56
        $region55: #{tpu_custom_call.1} parent=43 // pred_region
          %321 = dma.done [#allocation6], 3072
        $region56: #{tpu_custom_call.1} parent=43 // pred_fallthru
          _
        // Predicated region
        $region57: #{tpu_custom_call.1} parent=43 // pred_check
          %p322 = pneg %p117
        $region58: #{tpu_custom_call.1} parent=43 // pred_check_branch
          %324 = sbr.rel (%p322) target = $region60
        $region59: #{tpu_custom_call.1} parent=43 // pred_region
          %325 = dma.done [#allocation9], 3072
        $region60: #{tpu_custom_call.1} parent=43 // pred_fallthru
          _
        // Predicated region
        $region61: #{tpu_custom_call.1} parent=43 // pred_check
          %p326 = pneg %p138
        $region62: #{tpu_custom_call.1} parent=43 // pred_check_branch
          %328 = sbr.rel (%p326) target = $region64
        $region63: #{tpu_custom_call.1} parent=43 // pred_region
          %329 = dma.done [#allocation9], 1024
        $region64: #{tpu_custom_call.1} parent=43 // pred_fallthru
          _
        // Predicated region
        $region65: #{tpu_custom_call.1} parent=43 // pred_check
          %p330 = pneg %p159
        $region66: #{tpu_custom_call.1} parent=43 // pred_check_branch
          %332 = sbr.rel (%p330) target = $region68
        $region67: #{tpu_custom_call.1} parent=43 // pred_region
          %333 = dma.done [#allocation12], 128
        $region68: #{tpu_custom_call.1} parent=43 // pred_fallthru
          _
        %s334 = sand.u32 %s36, 1
        %s335 = scalar_lea.sflag [#allocation3], %s334
        %s336 = sand.u32 %s36, 1
        %s337 = smul.addr %s336, 16
        %s338 = scalar_lea.vmem [#allocation2], %s337
        %p339 = pneg %p49
        %p340 = pneg %p46
        %s341 = sand.u32 %s28, 1
        %s342 = scalar_lea.sflag [#allocation6], %s341
        %s343 = sand.u32 %s62, 1
        %s344 = smul.addr %s343, 8
        %s345 = scalar_lea.vmem [#allocation5], %s344
        %p346 = pneg %p75
        %p347 = pneg %p72
        %p348 = pneg %p96
        %p349 = pneg %p93
        %p350 = pneg %p117
        %p351 = pneg %p114
        %p352 = pneg %p138
        %p353 = pneg %p135
        %p354 = pneg %p159
        %p355 = pneg %p156
        %p356 = pneg %p185
        %p357 = pneg %p182
        %s358 = sand.u32 %s172, 1
        %s359 = scalar_lea.sflag [#allocation4], %s358
        %s360 = sand.u32 %s172, 1
        %s361 = smul.addr %s360, 16
        %s362 = scalar_lea.vmem [#allocation13], %s361
        %v364 = vld [vmem:[#allocation11] sm:$0xff]
        %v365 = vld [vmem:[%s313] sm:$0xff]
        %v366 = vld [vmem:[%s304] sm:$0xff]
        %v367 = vld [vmem:[%s304 + $0x8] sm:$0xff]
        %v368 = vpack.c.bf16 %v367, %v366
        %v370 = vshrl.u32 %v368, 16
        %v372 = vrot.slane %v370, 7
        %v373 = vshll.u32 %v368, 16
        %v375 = vor.u32 %v372, %v373
        %vm377 = vcmask 1040384
        %vm378 = vsmask.f32 256
        %vm379 = vmand %vm377, %vm378
        %v380 = vsel %vm379, 0, %v375
        %v381 = vrot.slane %v373, 1
        %v382 = vor.u32 %v370, %v381
        %vm384 = vcmask 1047552
        %vm385 = vsmask.f32 7424
        %vm386 = vmand %vm384, %vm385
        %v387 = vsel %vm386, %v382, 0
        %v388 = vld [vmem:[#allocation7] sm:$0xf]
        %v389 = vld [vmem:[#allocation7 + $0x4] sm:$0xf]
        %v390 = vld [vmem:[#allocation7 + $0x8] sm:$0xf]
        %v391 = vld [vmem:[#allocation7 + $0xc] sm:$0xf]
        %v392 = vld [vmem:[#allocation7 + $0x10] sm:$0xf]
        %v393 = vld [vmem:[#allocation7 + $0x14] sm:$0xf]
        %v394 = vld [vmem:[#allocation7 + $0x18] sm:$0xf]
        %v395 = vld [vmem:[#allocation7 + $0x1c] sm:$0xf]
        %v396 = vld [vmem:[#allocation7 + $0x20] sm:$0xf]
        %v397 = vld [vmem:[#allocation7 + $0x24] sm:$0xf]
        %v398 = vld [vmem:[#allocation7 + $0x28] sm:$0xf]
        %v399 = vld [vmem:[#allocation7 + $0x2c] sm:$0xf]
        %v400 = vld [vmem:[#allocation7 + $0x30] sm:$0xf]
        %v401 = vld [vmem:[#allocation7 + $0x34] sm:$0xf]
        %v402 = vld [vmem:[#allocation7 + $0x38] sm:$0xf]
        %v403 = vld [vmem:[#allocation7 + $0x3c] sm:$0xf]
        %s404 = scalar_lea.vmem [#allocation7], 64
        %v405 = vld [vmem:[%s404] sm:$0xf]
        %v406 = vld [vmem:[%s404 + $0x4] sm:$0xf]
        %v407 = vld [vmem:[%s404 + $0x8] sm:$0xf]
        %v408 = vld [vmem:[%s404 + $0xc] sm:$0xf]
        %v409 = vld [vmem:[%s404 + $0x10] sm:$0xf]
        %v410 = vld [vmem:[%s404 + $0x14] sm:$0xf]
        %v411 = vld [vmem:[%s404 + $0x18] sm:$0xf]
        %v412 = vld [vmem:[%s404 + $0x1c] sm:$0xf]
        %v413 = vld [vmem:[%s404 + $0x20] sm:$0xf]
        %v414 = vld [vmem:[%s404 + $0x24] sm:$0xf]
        %v415 = vld [vmem:[%s404 + $0x28] sm:$0xf]
        %v416 = vld [vmem:[%s404 + $0x2c] sm:$0xf]
        %v417 = vld [vmem:[%s404 + $0x30] sm:$0xf]
        %v418 = vld [vmem:[%s404 + $0x34] sm:$0xf]
        %v419 = vld [vmem:[%s404 + $0x38] sm:$0xf]
        %v420 = vld [vmem:[%s404 + $0x3c] sm:$0xf]
        %v437 = vunpack.c.l.b16 %v405
        %v438 = vunpack.c.l.b16 %v406
        %v439 = vunpack.c.l.b16 %v407
        %v440 = vunpack.c.l.b16 %v408
        %v441 = vunpack.c.l.b16 %v409
        %v442 = vunpack.c.l.b16 %v410
        %v443 = vunpack.c.l.b16 %v411
        %v444 = vunpack.c.l.b16 %v412
        %v445 = vunpack.c.l.b16 %v413
        %v446 = vunpack.c.l.b16 %v414
        %v447 = vunpack.c.l.b16 %v415
        %v448 = vunpack.c.l.b16 %v416
        %v449 = vunpack.c.l.b16 %v417
        %v450 = vunpack.c.l.b16 %v418
        %v451 = vunpack.c.l.b16 %v419
        %v452 = vunpack.c.l.b16 %v420
        %v453 = vpack.c.b16 %v438, %v437
        %v454 = vpack.c.b16 %v440, %v439
        %v455 = vpack.c.b16 %v442, %v441
        %v456 = vpack.c.b16 %v444, %v443
        %v457 = vpack.c.b16 %v446, %v445
        %v458 = vpack.c.b16 %v448, %v447
        %v459 = vpack.c.b16 %v450, %v449
        %v460 = vpack.c.b16 %v452, %v451
        %469 = vmatprep.subr.bf16.mxu0 0
        %470 = vmatpush1.bf16.msra.mxu0 %v453
        %471 = vmatprep.subr.bf16.mxu0 0
        %472 = vmatpush1.bf16.msra.mxu0 %v454
        %473 = vmatprep.subr.bf16.mxu0 0
        %474 = vmatpush1.bf16.msra.mxu0 %v455
        %475 = vmatprep.subr.bf16.mxu0 0
        %476 = vmatpush1.bf16.msra.mxu0 %v456
        %477 = vmatprep.subr.bf16.mxu0 0
        %478 = vmatpush1.bf16.msra.mxu0 %v457
        %479 = vmatprep.subr.bf16.mxu0 0
        %480 = vmatpush1.bf16.msra.mxu0 %v458
        %481 = vmatprep.subr.bf16.mxu0 0
        %482 = vmatpush1.bf16.msra.mxu0 %v459
        %483 = vmatprep.subr.bf16.mxu0 0
        %484 = vmatpush1.bf16.msra.mxu0 %v460
        %485 = vmatprep.subr.bf16.mxu0 0
        %486 = vmatpush1.bf16.msra.mxu0 0
        %487 = vmatprep.subr.bf16.mxu0 0
        %488 = vmatpush1.bf16.msra.mxu0 0
        %489 = vmatprep.subr.bf16.mxu0 0
        %490 = vmatpush1.bf16.msra.mxu0 0
        %491 = vmatprep.subr.bf16.mxu0 0
        %492 = vmatpush1.bf16.msra.mxu0 0
        %493 = vmatprep.subr.bf16.mxu0 0
        %494 = vmatpush1.bf16.msra.mxu0 0
        %495 = vmatprep.subr.bf16.mxu0 0
        %496 = vmatpush1.bf16.msra.mxu0 0
        %497 = vmatprep.subr.bf16.mxu0 0
        %498 = vmatpush1.bf16.msra.mxu0 0
        %499 = vmatprep.subr.bf16.mxu0 0
        %500 = vmatpush1.bf16.msra.mxu0 0
        %501 = vmatprep.mubr.bf16.mxu0 0
        %502 = vmatmul.mubr.bf16.gmra.mrb[0].mxu0 %v368
        %v503 = vpop.f32.mrb[0].mxu0
        %v504 = vadd.f32 0.0, %v503
        %v505 = vpop.f32.mrb[0].mxu0
        %v506 = vpop.f32.mrb[0].mxu0
        %v507 = vadd.f32 0.0, %v506
        %v508 = vpop.f32.mrb[0].mxu0
        %509 = vdwg.mxu0
        %v526 = vunpack.c.l.b16 %v388
        %v527 = vunpack.c.l.b16 %v389
        %v528 = vunpack.c.l.b16 %v390
        %v529 = vunpack.c.l.b16 %v391
        %v530 = vunpack.c.l.b16 %v392
        %v531 = vunpack.c.l.b16 %v393
        %v532 = vunpack.c.l.b16 %v394
        %v533 = vunpack.c.l.b16 %v395
        %v534 = vunpack.c.l.b16 %v396
        %v535 = vunpack.c.l.b16 %v397
        %v536 = vunpack.c.l.b16 %v398
        %v537 = vunpack.c.l.b16 %v399
        %v538 = vunpack.c.l.b16 %v400
        %v539 = vunpack.c.l.b16 %v401
        %v540 = vunpack.c.l.b16 %v402
        %v541 = vunpack.c.l.b16 %v403
        %v542 = vpack.c.b16 %v527, %v526
        %v543 = vpack.c.b16 %v529, %v528
        %v544 = vpack.c.b16 %v531, %v530
        %v545 = vpack.c.b16 %v533, %v532
        %v546 = vpack.c.b16 %v535, %v534
        %v547 = vpack.c.b16 %v537, %v536
        %v548 = vpack.c.b16 %v539, %v538
        %v549 = vpack.c.b16 %v541, %v540
        %558 = vmatprep.subr.bf16.mxu0 0
        %559 = vmatpush1.bf16.msra.mxu0 %v542
        %560 = vmatprep.subr.bf16.mxu0 0
        %561 = vmatpush1.bf16.msra.mxu0 %v543
        %562 = vmatprep.subr.bf16.mxu0 0
        %563 = vmatpush1.bf16.msra.mxu0 %v544
        %564 = vmatprep.subr.bf16.mxu0 0
        %565 = vmatpush1.bf16.msra.mxu0 %v545
        %566 = vmatprep.subr.bf16.mxu0 0
        %567 = vmatpush1.bf16.msra.mxu0 %v546
        %568 = vmatprep.subr.bf16.mxu0 0
        %569 = vmatpush1.bf16.msra.mxu0 %v547
        %570 = vmatprep.subr.bf16.mxu0 0
        %571 = vmatpush1.bf16.msra.mxu0 %v548
        %572 = vmatprep.subr.bf16.mxu0 0
        %573 = vmatpush1.bf16.msra.mxu0 %v549
        %574 = vmatprep.subr.bf16.mxu0 0
        %575 = vmatpush1.bf16.msra.mxu0 0
        %576 = vmatprep.subr.bf16.mxu0 0
        %577 = vmatpush1.bf16.msra.mxu0 0
        %578 = vmatprep.subr.bf16.mxu0 0
        %579 = vmatpush1.bf16.msra.mxu0 0
        %580 = vmatprep.subr.bf16.mxu0 0
        %581 = vmatpush1.bf16.msra.mxu0 0
        %582 = vmatprep.subr.bf16.mxu0 0
        %583 = vmatpush1.bf16.msra.mxu0 0
        %584 = vmatprep.subr.bf16.mxu0 0
        %585 = vmatpush1.bf16.msra.mxu0 0
        %586 = vmatprep.subr.bf16.mxu0 0
        %587 = vmatpush1.bf16.msra.mxu0 0
        %588 = vmatprep.subr.bf16.mxu0 0
        %589 = vmatpush1.bf16.msra.mxu0 0
        %590 = vmatprep.mubr.bf16.mxu0 0
        %591 = vmatmul.mubr.bf16.gmra.mrb[0].mxu0 %v380
        %v592 = vpop.f32.mrb[0].mxu0
        %v593 = vadd.f32 %v504, %v592
        %v594 = vpop.f32.mrb[0].mxu0
        %v595 = vpop.f32.mrb[0].mxu0
        %v596 = vadd.f32 %v507, %v595
        %v597 = vpop.f32.mrb[0].mxu0
        %598 = vdwg.mxu0
        %s599 = scalar_lea.vmem [#allocation7], 128
        %v600 = vld [vmem:[%s599] sm:$0xf]
        %v601 = vld [vmem:[%s599 + $0x4] sm:$0xf]
        %v602 = vld [vmem:[%s599 + $0x8] sm:$0xf]
        %v603 = vld [vmem:[%s599 + $0xc] sm:$0xf]
        %v604 = vld [vmem:[%s599 + $0x10] sm:$0xf]
        %v605 = vld [vmem:[%s599 + $0x14] sm:$0xf]
        %v606 = vld [vmem:[%s599 + $0x18] sm:$0xf]
        %v607 = vld [vmem:[%s599 + $0x1c] sm:$0xf]
        %v608 = vld [vmem:[%s599 + $0x20] sm:$0xf]
        %v609 = vld [vmem:[%s599 + $0x24] sm:$0xf]
        %v610 = vld [vmem:[%s599 + $0x28] sm:$0xf]
        %v611 = vld [vmem:[%s599 + $0x2c] sm:$0xf]
        %v612 = vld [vmem:[%s599 + $0x30] sm:$0xf]
        %v613 = vld [vmem:[%s599 + $0x34] sm:$0xf]
        %v614 = vld [vmem:[%s599 + $0x38] sm:$0xf]
        %v615 = vld [vmem:[%s599 + $0x3c] sm:$0xf]
        %v632 = vunpack.c.l.b16 %v600
        %v633 = vunpack.c.l.b16 %v601
        %v634 = vunpack.c.l.b16 %v602
        %v635 = vunpack.c.l.b16 %v603
        %v636 = vunpack.c.l.b16 %v604
        %v637 = vunpack.c.l.b16 %v605
        %v638 = vunpack.c.l.b16 %v606
        %v639 = vunpack.c.l.b16 %v607
        %v640 = vunpack.c.l.b16 %v608
        %v641 = vunpack.c.l.b16 %v609
        %v642 = vunpack.c.l.b16 %v610
        %v643 = vunpack.c.l.b16 %v611
        %v644 = vunpack.c.l.b16 %v612
        %v645 = vunpack.c.l.b16 %v613
        %v646 = vunpack.c.l.b16 %v614
        %v647 = vunpack.c.l.b16 %v615
        %v648 = vpack.c.b16 %v633, %v632
        %v649 = vpack.c.b16 %v635, %v634
        %v650 = vpack.c.b16 %v637, %v636
        %v651 = vpack.c.b16 %v639, %v638
        %v652 = vpack.c.b16 %v641, %v640
        %v653 = vpack.c.b16 %v643, %v642
        %v654 = vpack.c.b16 %v645, %v644
        %v655 = vpack.c.b16 %v647, %v646
        %664 = vmatprep.subr.bf16.mxu0 0
        %665 = vmatpush1.bf16.msra.mxu0 %v648
        %666 = vmatprep.subr.bf16.mxu0 0
        %667 = vmatpush1.bf16.msra.mxu0 %v649
        %668 = vmatprep.subr.bf16.mxu0 0
        %669 = vmatpush1.bf16.msra.mxu0 %v650
        %670 = vmatprep.subr.bf16.mxu0 0
        %671 = vmatpush1.bf16.msra.mxu0 %v651
        %672 = vmatprep.subr.bf16.mxu0 0
        %673 = vmatpush1.bf16.msra.mxu0 %v652
        %674 = vmatprep.subr.bf16.mxu0 0
        %675 = vmatpush1.bf16.msra.mxu0 %v653
        %676 = vmatprep.subr.bf16.mxu0 0
        %677 = vmatpush1.bf16.msra.mxu0 %v654
        %678 = vmatprep.subr.bf16.mxu0 0
        %679 = vmatpush1.bf16.msra.mxu0 %v655
        %680 = vmatprep.subr.bf16.mxu0 0
        %681 = vmatpush1.bf16.msra.mxu0 0
        %682 = vmatprep.subr.bf16.mxu0 0
        %683 = vmatpush1.bf16.msra.mxu0 0
        %684 = vmatprep.subr.bf16.mxu0 0
        %685 = vmatpush1.bf16.msra.mxu0 0
        %686 = vmatprep.subr.bf16.mxu0 0
        %687 = vmatpush1.bf16.msra.mxu0 0
        %688 = vmatprep.subr.bf16.mxu0 0
        %689 = vmatpush1.bf16.msra.mxu0 0
        %690 = vmatprep.subr.bf16.mxu0 0
        %691 = vmatpush1.bf16.msra.mxu0 0
        %692 = vmatprep.subr.bf16.mxu0 0
        %693 = vmatpush1.bf16.msra.mxu0 0
        %694 = vmatprep.subr.bf16.mxu0 0
        %695 = vmatpush1.bf16.msra.mxu0 0
        %696 = vmatprep.mubr.bf16.mxu0 0
        %697 = vmatmul.mubr.bf16.gmra.mrb[0].mxu0 %v387
        %v698 = vpop.f32.mrb[0].mxu0
        %v699 = vadd.f32 0.0, %v698
        %v700 = vpop.f32.mrb[0].mxu0
        %v701 = vpop.f32.mrb[0].mxu0
        %v702 = vadd.f32 0.0, %v701
        %v703 = vpop.f32.mrb[0].mxu0
        %704 = vdwg.mxu0
        %v705 = vadd.f32 %v593, %v699
        %v706 = vadd.f32 %v596, %v702
        %v707 = vlaneseq
        %v708 = vshrl.u32 %v707, 7
        %v709 = vsub.s32 0, %v708
        %v710 = vrot.slane %v364, %v709
        %v711 = vadd.f32 %v705, %v710
        %v712 = vadd.f32 %v706, %v710
        %v713 = vmul.f32 %v711, %v711
        %v714 = vmul.f32 %v712, %v712
        %715 = vadd.xlane.f32.xlu0 %v713
        %v716 = vpop.xlane.xlu0 %715
        %717 = vadd.xlane.f32.xlu0 %v714
        %v718 = vpop.xlane.xlu0 %717
        %v719 = vmax.f32 %v716, 1e-24
        %v720 = vmax.f32 %v718, 1e-24
        %v721 = vrsqrt.pop %v719
        %v722 = vrsqrt.pop %v720
        %v723 = vmul.f32 %v711, %v721
        %v724 = vmul.f32 %v712, %v722
        %v725 = vlaneseq
        %v726 = vshrl.u32 %v725, 7
        %v727 = vsub.s32 1, %v726
        %v728 = vrot.slane %v364, %v727
        %v729 = vmul.f32 %v723, %v728
        %v730 = vmul.f32 %v724, %v728
        %v731 = vlaneseq
        %v732 = vshrl.u32 %v731, 7
        %v733 = vsub.s32 0, %v732
        %v734 = vrot.slane %v365, %v733
        %v735 = vmul.f32 %v729, %v734
        %v736 = vmul.f32 %v730, %v734
        %v737 = vlaneseq
        %v738 = vshrl.u32 %v737, 7
        %v739 = vsub.s32 1, %v738
        %v740 = vrot.slane %v365, %v739
        %v741 = vadd.f32 %v735, %v740
        %v742 = vadd.f32 %v736, %v740
        %v743 = vxor.u32 %v741, 2147483648
        %v744 = vxor.u32 %v742, 2147483648
        %v745 = vmul.f32 %v743, 1.442695
        %v746 = vpow.pop %v745
        %v747 = vmul.f32 %v744, 1.442695
        %v748 = vpow.pop %v747
        %v749 = vadd.f32 %v746, 1.0
        %v750 = vadd.f32 %v748, 1.0
        %v751 = vrcp.pop %v749
        %v752 = vmul.f32 1.0, %v751
        %v753 = vrcp.pop %v750
        %v754 = vmul.f32 1.0, %v753
        %v755 = vmul.f32 %v741, %v752
        %v756 = vmul.f32 %v742, %v754
        %v757 = vpack.c.bf16 %v756, %v755
        %v759 = vshrl.u32 %v757, 16
        %v761 = vrot.slane %v759, 7
        %v762 = vshll.u32 %v757, 16
        %v764 = vor.u32 %v761, %v762
        %v766 = vsel %vm379, 0, %v764
        %v767 = vrot.slane %v762, 1
        %v768 = vor.u32 %v759, %v767
        %v770 = vsel %vm386, %v768, 0
        %v771 = vld [vmem:[#allocation8] sm:$0xf]
        %v772 = vld [vmem:[#allocation8 + $0x4] sm:$0xf]
        %v773 = vld [vmem:[#allocation8 + $0x8] sm:$0xf]
        %v774 = vld [vmem:[#allocation8 + $0xc] sm:$0xf]
        %v775 = vld [vmem:[#allocation8 + $0x10] sm:$0xf]
        %v776 = vld [vmem:[#allocation8 + $0x14] sm:$0xf]
        %v777 = vld [vmem:[#allocation8 + $0x18] sm:$0xf]
        %v778 = vld [vmem:[#allocation8 + $0x1c] sm:$0xf]
        %v779 = vld [vmem:[#allocation8 + $0x20] sm:$0xf]
        %v780 = vld [vmem:[#allocation8 + $0x24] sm:$0xf]
        %v781 = vld [vmem:[#allocation8 + $0x28] sm:$0xf]
        %v782 = vld [vmem:[#allocation8 + $0x2c] sm:$0xf]
        %v783 = vld [vmem:[#allocation8 + $0x30] sm:$0xf]
        %v784 = vld [vmem:[#allocation8 + $0x34] sm:$0xf]
        %v785 = vld [vmem:[#allocation8 + $0x38] sm:$0xf]
        %v786 = vld [vmem:[#allocation8 + $0x3c] sm:$0xf]
        %s787 = scalar_lea.vmem [#allocation8], 64
        %v788 = vld [vmem:[%s787] sm:$0xf]
        %v789 = vld [vmem:[%s787 + $0x4] sm:$0xf]
        %v790 = vld [vmem:[%s787 + $0x8] sm:$0xf]
        %v791 = vld [vmem:[%s787 + $0xc] sm:$0xf]
        %v792 = vld [vmem:[%s787 + $0x10] sm:$0xf]
        %v793 = vld [vmem:[%s787 + $0x14] sm:$0xf]
        %v794 = vld [vmem:[%s787 + $0x18] sm:$0xf]
        %v795 = vld [vmem:[%s787 + $0x1c] sm:$0xf]
        %v796 = vld [vmem:[%s787 + $0x20] sm:$0xf]
        %v797 = vld [vmem:[%s787 + $0x24] sm:$0xf]
        %v798 = vld [vmem:[%s787 + $0x28] sm:$0xf]
        %v799 = vld [vmem:[%s787 + $0x2c] sm:$0xf]
        %v800 = vld [vmem:[%s787 + $0x30] sm:$0xf]
        %v801 = vld [vmem:[%s787 + $0x34] sm:$0xf]
        %v802 = vld [vmem:[%s787 + $0x38] sm:$0xf]
        %v803 = vld [vmem:[%s787 + $0x3c] sm:$0xf]
        %v820 = vunpack.c.l.b16 %v788
        %v821 = vunpack.c.l.b16 %v789
        %v822 = vunpack.c.l.b16 %v790
        %v823 = vunpack.c.l.b16 %v791
        %v824 = vunpack.c.l.b16 %v792
        %v825 = vunpack.c.l.b16 %v793
        %v826 = vunpack.c.l.b16 %v794
        %v827 = vunpack.c.l.b16 %v795
        %v828 = vunpack.c.l.b16 %v796
        %v829 = vunpack.c.l.b16 %v797
        %v830 = vunpack.c.l.b16 %v798
        %v831 = vunpack.c.l.b16 %v799
        %v832 = vunpack.c.l.b16 %v800
        %v833 = vunpack.c.l.b16 %v801
        %v834 = vunpack.c.l.b16 %v802
        %v835 = vunpack.c.l.b16 %v803
        %v836 = vpack.c.b16 %v821, %v820
        %v837 = vpack.c.b16 %v823, %v822
        %v838 = vpack.c.b16 %v825, %v824
        %v839 = vpack.c.b16 %v827, %v826
        %v840 = vpack.c.b16 %v829, %v828
        %v841 = vpack.c.b16 %v831, %v830
        %v842 = vpack.c.b16 %v833, %v832
        %v843 = vpack.c.b16 %v835, %v834
        %852 = vmatprep.subr.bf16.mxu0 0
        %853 = vmatpush1.bf16.msra.mxu0 %v836
        %854 = vmatprep.subr.bf16.mxu0 0
        %855 = vmatpush1.bf16.msra.mxu0 %v837
        %856 = vmatprep.subr.bf16.mxu0 0
        %857 = vmatpush1.bf16.msra.mxu0 %v838
        %858 = vmatprep.subr.bf16.mxu0 0
        %859 = vmatpush1.bf16.msra.mxu0 %v839
        %860 = vmatprep.subr.bf16.mxu0 0
        %861 = vmatpush1.bf16.msra.mxu0 %v840
        %862 = vmatprep.subr.bf16.mxu0 0
        %863 = vmatpush1.bf16.msra.mxu0 %v841
        %864 = vmatprep.subr.bf16.mxu0 0
        %865 = vmatpush1.bf16.msra.mxu0 %v842
        %866 = vmatprep.subr.bf16.mxu0 0
        %867 = vmatpush1.bf16.msra.mxu0 %v843
        %868 = vmatprep.subr.bf16.mxu0 0
        %869 = vmatpush1.bf16.msra.mxu0 0
        %870 = vmatprep.subr.bf16.mxu0 0
        %871 = vmatpush1.bf16.msra.mxu0 0
        %872 = vmatprep.subr.bf16.mxu0 0
        %873 = vmatpush1.bf16.msra.mxu0 0
        %874 = vmatprep.subr.bf16.mxu0 0
        %875 = vmatpush1.bf16.msra.mxu0 0
        %876 = vmatprep.subr.bf16.mxu0 0
        %877 = vmatpush1.bf16.msra.mxu0 0
        %878 = vmatprep.subr.bf16.mxu0 0
        %879 = vmatpush1.bf16.msra.mxu0 0
        %880 = vmatprep.subr.bf16.mxu0 0
        %881 = vmatpush1.bf16.msra.mxu0 0
        %882 = vmatprep.subr.bf16.mxu0 0
        %883 = vmatpush1.bf16.msra.mxu0 0
        %884 = vmatprep.mubr.bf16.mxu0 0
        %885 = vmatmul.mubr.bf16.gmra.mrb[0].mxu0 %v757
        %v886 = vpop.f32.mrb[0].mxu0
        %v887 = vadd.f32 0.0, %v886
        %v888 = vpop.f32.mrb[0].mxu0
        %v889 = vpop.f32.mrb[0].mxu0
        %v890 = vadd.f32 0.0, %v889
        %v891 = vpop.f32.mrb[0].mxu0
        %892 = vdwg.mxu0
        %v909 = vunpack.c.l.b16 %v771
        %v910 = vunpack.c.l.b16 %v772
        %v911 = vunpack.c.l.b16 %v773
        %v912 = vunpack.c.l.b16 %v774
        %v913 = vunpack.c.l.b16 %v775
        %v914 = vunpack.c.l.b16 %v776
        %v915 = vunpack.c.l.b16 %v777
        %v916 = vunpack.c.l.b16 %v778
        %v917 = vunpack.c.l.b16 %v779
        %v918 = vunpack.c.l.b16 %v780
        %v919 = vunpack.c.l.b16 %v781
        %v920 = vunpack.c.l.b16 %v782
        %v921 = vunpack.c.l.b16 %v783
        %v922 = vunpack.c.l.b16 %v784
        %v923 = vunpack.c.l.b16 %v785
        %v924 = vunpack.c.l.b16 %v786
        %v925 = vpack.c.b16 %v910, %v909
        %v926 = vpack.c.b16 %v912, %v911
        %v927 = vpack.c.b16 %v914, %v913
        %v928 = vpack.c.b16 %v916, %v915
        %v929 = vpack.c.b16 %v918, %v917
        %v930 = vpack.c.b16 %v920, %v919
        %v931 = vpack.c.b16 %v922, %v921
        %v932 = vpack.c.b16 %v924, %v923
        %941 = vmatprep.subr.bf16.mxu0 0
        %942 = vmatpush1.bf16.msra.mxu0 %v925
        %943 = vmatprep.subr.bf16.mxu0 0
        %944 = vmatpush1.bf16.msra.mxu0 %v926
        %945 = vmatprep.subr.bf16.mxu0 0
        %946 = vmatpush1.bf16.msra.mxu0 %v927
        %947 = vmatprep.subr.bf16.mxu0 0
        %948 = vmatpush1.bf16.msra.mxu0 %v928
        %949 = vmatprep.subr.bf16.mxu0 0
        %950 = vmatpush1.bf16.msra.mxu0 %v929
        %951 = vmatprep.subr.bf16.mxu0 0
        %952 = vmatpush1.bf16.msra.mxu0 %v930
        %953 = vmatprep.subr.bf16.mxu0 0
        %954 = vmatpush1.bf16.msra.mxu0 %v931
        %955 = vmatprep.subr.bf16.mxu0 0
        %956 = vmatpush1.bf16.msra.mxu0 %v932
        %957 = vmatprep.subr.bf16.mxu0 0
        %958 = vmatpush1.bf16.msra.mxu0 0
        %959 = vmatprep.subr.bf16.mxu0 0
        %960 = vmatpush1.bf16.msra.mxu0 0
        %961 = vmatprep.subr.bf16.mxu0 0
        %962 = vmatpush1.bf16.msra.mxu0 0
        %963 = vmatprep.subr.bf16.mxu0 0
        %964 = vmatpush1.bf16.msra.mxu0 0
        %965 = vmatprep.subr.bf16.mxu0 0
        %966 = vmatpush1.bf16.msra.mxu0 0
        %967 = vmatprep.subr.bf16.mxu0 0
        %968 = vmatpush1.bf16.msra.mxu0 0
        %969 = vmatprep.subr.bf16.mxu0 0
        %970 = vmatpush1.bf16.msra.mxu0 0
        %971 = vmatprep.subr.bf16.mxu0 0
        %972 = vmatpush1.bf16.msra.mxu0 0
        %973 = vmatprep.mubr.bf16.mxu0 0
        %974 = vmatmul.mubr.bf16.gmra.mrb[0].mxu0 %v766
        %v975 = vpop.f32.mrb[0].mxu0
        %v976 = vadd.f32 %v887, %v975
        %v977 = vpop.f32.mrb[0].mxu0
        %v978 = vpop.f32.mrb[0].mxu0
        %v979 = vadd.f32 %v890, %v978
        %v980 = vpop.f32.mrb[0].mxu0
        %981 = vdwg.mxu0
        %s982 = scalar_lea.vmem [#allocation8], 128
        %v983 = vld [vmem:[%s982] sm:$0xf]
        %v984 = vld [vmem:[%s982 + $0x4] sm:$0xf]
        %v985 = vld [vmem:[%s982 + $0x8] sm:$0xf]
        %v986 = vld [vmem:[%s982 + $0xc] sm:$0xf]
        %v987 = vld [vmem:[%s982 + $0x10] sm:$0xf]
        %v988 = vld [vmem:[%s982 + $0x14] sm:$0xf]
        %v989 = vld [vmem:[%s982 + $0x18] sm:$0xf]
        %v990 = vld [vmem:[%s982 + $0x1c] sm:$0xf]
        %v991 = vld [vmem:[%s982 + $0x20] sm:$0xf]
        %v992 = vld [vmem:[%s982 + $0x24] sm:$0xf]
        %v993 = vld [vmem:[%s982 + $0x28] sm:$0xf]
        %v994 = vld [vmem:[%s982 + $0x2c] sm:$0xf]
        %v995 = vld [vmem:[%s982 + $0x30] sm:$0xf]
        %v996 = vld [vmem:[%s982 + $0x34] sm:$0xf]
        %v997 = vld [vmem:[%s982 + $0x38] sm:$0xf]
        %v998 = vld [vmem:[%s982 + $0x3c] sm:$0xf]
        %v1015 = vunpack.c.l.b16 %v983
        %v1016 = vunpack.c.l.b16 %v984
        %v1017 = vunpack.c.l.b16 %v985
        %v1018 = vunpack.c.l.b16 %v986
        %v1019 = vunpack.c.l.b16 %v987
        %v1020 = vunpack.c.l.b16 %v988
        %v1021 = vunpack.c.l.b16 %v989
        %v1022 = vunpack.c.l.b16 %v990
        %v1023 = vunpack.c.l.b16 %v991
        %v1024 = vunpack.c.l.b16 %v992
        %v1025 = vunpack.c.l.b16 %v993
        %v1026 = vunpack.c.l.b16 %v994
        %v1027 = vunpack.c.l.b16 %v995
        %v1028 = vunpack.c.l.b16 %v996
        %v1029 = vunpack.c.l.b16 %v997
        %v1030 = vunpack.c.l.b16 %v998
        %v1031 = vpack.c.b16 %v1016, %v1015
        %v1032 = vpack.c.b16 %v1018, %v1017
        %v1033 = vpack.c.b16 %v1020, %v1019
        %v1034 = vpack.c.b16 %v1022, %v1021
        %v1035 = vpack.c.b16 %v1024, %v1023
        %v1036 = vpack.c.b16 %v1026, %v1025
        %v1037 = vpack.c.b16 %v1028, %v1027
        %v1038 = vpack.c.b16 %v1030, %v1029
        %1047 = vmatprep.subr.bf16.mxu0 0
        %1048 = vmatpush1.bf16.msra.mxu0 %v1031
        %1049 = vmatprep.subr.bf16.mxu0 0
        %1050 = vmatpush1.bf16.msra.mxu0 %v1032
        %1051 = vmatprep.subr.bf16.mxu0 0
        %1052 = vmatpush1.bf16.msra.mxu0 %v1033
        %1053 = vmatprep.subr.bf16.mxu0 0
        %1054 = vmatpush1.bf16.msra.mxu0 %v1034
        %1055 = vmatprep.subr.bf16.mxu0 0
        %1056 = vmatpush1.bf16.msra.mxu0 %v1035
        %1057 = vmatprep.subr.bf16.mxu0 0
        %1058 = vmatpush1.bf16.msra.mxu0 %v1036
        %1059 = vmatprep.subr.bf16.mxu0 0
        %1060 = vmatpush1.bf16.msra.mxu0 %v1037
        %1061 = vmatprep.subr.bf16.mxu0 0
        %1062 = vmatpush1.bf16.msra.mxu0 %v1038
        %1063 = vmatprep.subr.bf16.mxu0 0
        %1064 = vmatpush1.bf16.msra.mxu0 0
        %1065 = vmatprep.subr.bf16.mxu0 0
        %1066 = vmatpush1.bf16.msra.mxu0 0
        %1067 = vmatprep.subr.bf16.mxu0 0
        %1068 = vmatpush1.bf16.msra.mxu0 0
        %1069 = vmatprep.subr.bf16.mxu0 0
        %1070 = vmatpush1.bf16.msra.mxu0 0
        %1071 = vmatprep.subr.bf16.mxu0 0
        %1072 = vmatpush1.bf16.msra.mxu0 0
        %1073 = vmatprep.subr.bf16.mxu0 0
        %1074 = vmatpush1.bf16.msra.mxu0 0
        %1075 = vmatprep.subr.bf16.mxu0 0
        %1076 = vmatpush1.bf16.msra.mxu0 0
        %1077 = vmatprep.subr.bf16.mxu0 0
        %1078 = vmatpush1.bf16.msra.mxu0 0
        %1079 = vmatprep.mubr.bf16.mxu0 0
        %1080 = vmatmul.mubr.bf16.gmra.mrb[0].mxu0 %v770
        %v1081 = vpop.f32.mrb[0].mxu0
        %v1082 = vadd.f32 0.0, %v1081
        %v1083 = vpop.f32.mrb[0].mxu0
        %v1084 = vpop.f32.mrb[0].mxu0
        %v1085 = vadd.f32 0.0, %v1084
        %v1086 = vpop.f32.mrb[0].mxu0
        %1087 = vdwg.mxu0
        %v1088 = vadd.f32 %v976, %v1082
        %v1089 = vadd.f32 %v979, %v1085
        %v1090 = vlaneseq
        %v1091 = vshrl.u32 %v1090, 7
        %v1092 = vsub.s32 2, %v1091
        %v1093 = vrot.slane %v364, %v1092
        %v1094 = vadd.f32 %v1088, %v1093
        %v1095 = vadd.f32 %v1089, %v1093
        %v1096 = vmul.f32 %v1094, %v1094
        %v1097 = vmul.f32 %v1095, %v1095
        %1098 = vadd.xlane.f32.xlu0 %v1096
        %v1099 = vpop.xlane.xlu0 %1098
        %1100 = vadd.xlane.f32.xlu0 %v1097
        %v1101 = vpop.xlane.xlu0 %1100
        %v1102 = vmax.f32 %v1099, 1e-24
        %v1103 = vmax.f32 %v1101, 1e-24
        %v1104 = vrsqrt.pop %v1102
        %v1105 = vrsqrt.pop %v1103
        %v1106 = vmul.f32 %v1094, %v1104
        %v1107 = vmul.f32 %v1095, %v1105
        %v1108 = vlaneseq
        %v1109 = vshrl.u32 %v1108, 7
        %v1110 = vsub.s32 3, %v1109
        %v1111 = vrot.slane %v364, %v1110
        %v1112 = vmul.f32 %v1106, %v1111
        %v1113 = vmul.f32 %v1107, %v1111
        %v1114 = vxor.u32 %v1112, 2147483648
        %v1115 = vxor.u32 %v1113, 2147483648
        %v1116 = vmul.f32 %v1114, 1.442695
        %v1117 = vpow.pop %v1116
        %v1118 = vmul.f32 %v1115, 1.442695
        %v1119 = vpow.pop %v1118
        %v1120 = vadd.f32 %v1117, 1.0
        %v1121 = vadd.f32 %v1119, 1.0
        %v1122 = vrcp.pop %v1120
        %v1123 = vmul.f32 1.0, %v1122
        %v1124 = vrcp.pop %v1121
        %v1125 = vmul.f32 1.0, %v1124
        %v1126 = vmul.f32 %v1112, %v1123
        %v1127 = vmul.f32 %v1113, %v1125
        %v1128 = vld [vmem:[#allocation10] sm:$0xf]
        %v1129 = vld [vmem:[#allocation10 + $0x4] sm:$0xf]
        %v1130 = vld [vmem:[#allocation10 + $0x8] sm:$0xf]
        %v1131 = vld [vmem:[#allocation10 + $0xc] sm:$0xf]
        %v1132 = vld [vmem:[#allocation10 + $0x10] sm:$0xf]
        %v1133 = vld [vmem:[#allocation10 + $0x14] sm:$0xf]
        %v1134 = vld [vmem:[#allocation10 + $0x18] sm:$0xf]
        %v1135 = vld [vmem:[#allocation10 + $0x1c] sm:$0xf]
        %v1136 = vld [vmem:[#allocation10 + $0x20] sm:$0xf]
        %v1137 = vld [vmem:[#allocation10 + $0x24] sm:$0xf]
        %v1138 = vld [vmem:[#allocation10 + $0x28] sm:$0xf]
        %v1139 = vld [vmem:[#allocation10 + $0x2c] sm:$0xf]
        %v1140 = vld [vmem:[#allocation10 + $0x30] sm:$0xf]
        %v1141 = vld [vmem:[#allocation10 + $0x34] sm:$0xf]
        %v1142 = vld [vmem:[#allocation10 + $0x38] sm:$0xf]
        %v1143 = vld [vmem:[#allocation10 + $0x3c] sm:$0xf]
        %v1144 = vlaneseq
        %v1145 = vshrl.u32 %v1144, 7
        %v1146 = vsub.s32 4, %v1145
        %v1147 = vrot.slane %v364, %v1146
        %v1164 = vunpack.c.l.b16 %v1128
        %v1165 = vunpack.c.l.b16 %v1129
        %v1166 = vunpack.c.l.b16 %v1130
        %v1167 = vunpack.c.l.b16 %v1131
        %v1168 = vunpack.c.l.b16 %v1132
        %v1169 = vunpack.c.l.b16 %v1133
        %v1170 = vunpack.c.l.b16 %v1134
        %v1171 = vunpack.c.l.b16 %v1135
        %v1172 = vunpack.c.l.b16 %v1136
        %v1173 = vunpack.c.l.b16 %v1137
        %v1174 = vunpack.c.l.b16 %v1138
        %v1175 = vunpack.c.l.b16 %v1139
        %v1176 = vunpack.c.l.b16 %v1140
        %v1177 = vunpack.c.l.b16 %v1141
        %v1178 = vunpack.c.l.b16 %v1142
        %v1179 = vunpack.c.l.b16 %v1143
        %v1180 = vpack.c.b16 %v1165, %v1164
        %v1181 = vpack.c.b16 %v1167, %v1166
        %v1182 = vpack.c.b16 %v1169, %v1168
        %v1183 = vpack.c.b16 %v1171, %v1170
        %v1184 = vpack.c.b16 %v1173, %v1172
        %v1185 = vpack.c.b16 %v1175, %v1174
        %v1186 = vpack.c.b16 %v1177, %v1176
        %v1187 = vpack.c.b16 %v1179, %v1178
        %1196 = vmatprep.subr.bf16.mxu0 0
        %1197 = vmatpush1.bf16.msra.mxu0 %v1180
        %1198 = vmatprep.subr.bf16.mxu0 0
        %1199 = vmatpush1.bf16.msra.mxu0 %v1181
        %1200 = vmatprep.subr.bf16.mxu0 0
        %1201 = vmatpush1.bf16.msra.mxu0 %v1182
        %1202 = vmatprep.subr.bf16.mxu0 0
        %1203 = vmatpush1.bf16.msra.mxu0 %v1183
        %1204 = vmatprep.subr.bf16.mxu0 0
        %1205 = vmatpush1.bf16.msra.mxu0 %v1184
        %1206 = vmatprep.subr.bf16.mxu0 0
        %1207 = vmatpush1.bf16.msra.mxu0 %v1185
        %1208 = vmatprep.subr.bf16.mxu0 0
        %1209 = vmatpush1.bf16.msra.mxu0 %v1186
        %1210 = vmatprep.subr.bf16.mxu0 0
        %1211 = vmatpush1.bf16.msra.mxu0 %v1187
        %1212 = vmatprep.subr.bf16.mxu0 0
        %1213 = vmatpush1.bf16.msra.mxu0 0
        %1214 = vmatprep.subr.bf16.mxu0 0
        %1215 = vmatpush1.bf16.msra.mxu0 0
        %1216 = vmatprep.subr.bf16.mxu0 0
        %1217 = vmatpush1.bf16.msra.mxu0 0
        %1218 = vmatprep.subr.bf16.mxu0 0
        %1219 = vmatpush1.bf16.msra.mxu0 0
        %1220 = vmatprep.subr.bf16.mxu0 0
        %1221 = vmatpush1.bf16.msra.mxu0 0
        %1222 = vmatprep.subr.bf16.mxu0 0
        %1223 = vmatpush1.bf16.msra.mxu0 0
        %1224 = vmatprep.subr.bf16.mxu0 0
        %1225 = vmatpush1.bf16.msra.mxu0 0
        %1226 = vmatprep.subr.bf16.mxu0 0
        %1227 = vmatpush1.bf16.msra.mxu0 0
        %1228 = vmatprep.mubr.bf16.mxu0 0
        %1229 = vmatmul.mubr.bf16.gmra.mrb[0].mxu0 %v368
        %v1230 = vpop.f32.mrb[0].mxu0
        %v1231 = vadd.f32 %v1147, %v1230
        %v1232 = vpop.f32.mrb[0].mxu0
        %v1233 = vpop.f32.mrb[0].mxu0
        %v1234 = vadd.f32 %v1147, %v1233
        %v1235 = vpop.f32.mrb[0].mxu0
        %1236 = vdwg.mxu0
        %v1237 = vadd.f32 %v1126, %v1231
        %v1238 = vadd.f32 %v1127, %v1234
        %1239 = vst [vmem:[%s362] sm:$0xff] %v1237
        %1240 = vst [vmem:[%s362 + $0x8] sm:$0xff] %v1238
        %s1241 = sand.u32 %s172, 1
        %s1242 = scalar_lea.sflag [#allocation4], %s1241
        %s1243 = sand.u32 %s172, 1
        %s1244 = smul.addr %s1243, 16
        %s1245 = scalar_lea.vmem [#allocation13], %s1244
        // Predicated region
        $region69: #{tpu_custom_call.1} parent=43 // pred_check
          %p1246 = pneg %p182
        $region70: #{tpu_custom_call.1} parent=43 // pred_check_branch
          %1248 = sbr.rel (%p1246) target = $region72
        $region71: #{tpu_custom_call.1} parent=43 // pred_region
          %s1250 = ssub.s32 256, 256
          %1251 = vsyncadd %s1242, %s1250
          %s1252 = smul.addr %s28, 2
          %s1253 = smul.addr %s1252, 128
          %s1254 = scalar_lea.hbm %s6, %s1253
          %s1255 = sshll.u32 %s1245, 4
          %s1256 = int_to_ptr.vmem [resolvable:$true] %s1255
          %1261 = dma.vmem_to_hbm [thread:$0]  %s1256, 256, %s1254, %s1242, 128, 128, 8
        $region72: #{tpu_custom_call.1} parent=43 // pred_fallthru
          _
      $region44: #{tpu_custom_call.1} parent=5 // pred_fallthru
        _
      %p1262 = scmp.le.s32.totalorder 2, %s23
      // Predicated region
      $region73: #{tpu_custom_call.1} parent=5 // pred_check
        %p1263 = pneg %p1262
      $region74: #{tpu_custom_call.1} parent=5 // pred_check_branch
        %1265 = sbr.rel (%p1263) target = $region76
      $region75: #{tpu_custom_call.1} parent=5 // pred_region
        %s1266 = ssub.s32 %s23, 2
        // Predicated region
        $region77: #{tpu_custom_call.1} parent=75 // pred_check
          %p1267 = pneg %p188
        $region78: #{tpu_custom_call.1} parent=75 // pred_check_branch
          %1269 = sbr.rel (%p1267) target = $region80
        $region79: #{tpu_custom_call.1} parent=75 // pred_region
          %s1270 = sand.u32 %s173, 1
          %s1271 = scalar_lea.sflag [#allocation4], %s1270
          %s1272 = sand.u32 %s173, 1
          %s1273 = smul.addr %s1272, 16
          %s1274 = scalar_lea.vmem [#allocation13], %s1273
          %1275 = dma.done %s1271, 256
        $region80: #{tpu_custom_call.1} parent=75 // pred_fallthru
          _
      $region76: #{tpu_custom_call.1} parent=5 // pred_fallthru
        _
    $region6: #{tpu_custom_call.1} parent=1 // loop_footer
      %s27 = sadd.s32 1, %s23
    $region7: #{tpu_custom_call.1} parent=1 // loop_footer_branch
      %22 = sbr.rel target = $region3
    $region8: #{tpu_custom_call.1} parent=1 // loop_exit
      _
    %1276 = vsyncpa [#allocation3], 1
    %s1277 = scalar_lea.sflag [#allocation3], 1
    %1278 = vsyncpa %s1277, 1
    %1279 = vsyncpa [#allocation6], 1
    %s1280 = scalar_lea.sflag [#allocation6], 1
    %1281 = vsyncpa %s1280, 1
    %1282 = vsyncpa [#allocation9], 1
    %1283 = vsyncpa [#allocation12], 1
    %1284 = vsyncpa [#allocation4], 1
    %s1285 = scalar_lea.sflag [#allocation4], 1
    %1286 = vsyncpa %s1285, 1

</llo_original>
